<compile_context>
chip_gen: v5e
topology: v5e:2x2
jax: 0.10.0
libtpu: 0.0.40
codegen_flags: <defaults>
</compile_context>

<pallas_src>
import functools

import numpy as np
import jax
import jax.numpy as jnp
from jax.experimental import pallas as pl
from jax.experimental.pallas import tpu as pltpu

THRESHOLD = 1.0


def _alpha_tau(alpha, beta):
    return float(np.log(alpha) / (np.log(beta) - np.log(alpha)))


def make_fcnet_kernel(alpha, beta, num_steps, threshold=THRESHOLD):
    a = float(np.clip(alpha, 0.0, 1.0))      # excitatory decay
    b = float(np.clip(beta, 0.0, 1.0))       # inhibitory decay
    tau = _alpha_tau(a, b)
    T = int(num_steps)

    def kernel(x_ref, w1_ref, b1_ref, w2_ref, b2_ref,   # inputs  (whole, VMEM)
               out_ref,                                  # output  (B, 2*T*O)
               spk1_slab):                               # VMEM scratch (T*B, H)
        TB, _ = x_ref.shape
        B = TB // T
        H = w1_ref.shape[1]
        O = w2_ref.shape[1]

        # ---- Phase 1: Linear-1 hoisted over all time steps (MXU matmul #1) ----
        # (T*B, F_in) @ (F_in, H) + (1, H)
        cur1_all = jnp.dot(x_ref[...], w1_ref[...],
                           preferred_element_type=jnp.float32) + b1_ref[...]

        # ---- Phase 2: layer-1 Alpha recurrence (reset='zero'), VPU-only. ----
        # State carried in registers across the unrolled loop; spk1 for every
        # step is packed into the (T*B, H) VMEM slab for the hoisted Linear-2.
        se1 = jnp.zeros((B, H), jnp.float32)
        si1 = jnp.zeros((B, H), jnp.float32)
        m1 = jnp.zeros((B, H), jnp.float32)
        for t in range(T):                               # static, fully unrolled
            cur1 = cur1_all[t * B:(t + 1) * B, :]        # (B, H) static slice
            keep1 = jnp.where(m1 > threshold, 0.0, 1.0)  # reset from PREVIOUS mem
            nm1 = tau * (a * se1 + b * si1) * keep1      # +/-cur1 cancels exactly
            se1 = (a * se1 + cur1) * keep1
            si1 = (b * si1 - cur1) * keep1
            m1 = nm1
            spk1_slab[t * B:(t + 1) * B, :] = jnp.where(nm1 > threshold, 1.0, 0.0)

        # ---- Phase 3: Linear-2 hoisted over all time steps (MXU matmul #2) ----
        # (T*B, H) @ (H, O) + (1, O)
        cur2_all = jnp.dot(spk1_slab[...], w2_ref[...],
                           preferred_element_type=jnp.float32) + b2_ref[...]

        # ---- Phase 4: layer-2 Alpha recurrence (reset='none'), VPU-only. ----
        se2 = jnp.zeros((B, O), jnp.float32)
        si2 = jnp.zeros((B, O), jnp.float32)
        spk2_steps = []
        nm2_steps = []
        for t in range(T):
            cur2 = cur2_all[t * B:(t + 1) * B, :]        # (B, O) static slice
            nm2 = tau * (a * se2 + b * si2)              # +/-cur2 cancels exactly
            se2 = a * se2 + cur2
            si2 = b * si2 - cur2
            spk2_steps.append(jnp.where(nm2 > threshold, 1.0, 0.0))
            nm2_steps.append(nm2)

        # Accumulated in registers; two aligned, unmasked full-width stores into
        # the single merged (B, 2*T*O) output slab (one HBM writeback DMA).
        out_ref[:, :T * O] = jnp.concatenate(spk2_steps, axis=1)   # (B, T*O)
        out_ref[:, T * O:] = jnp.concatenate(nm2_steps, axis=1)    # (B, T*O)

    return kernel


def simple_fcnet_pallas(x_btf, params, *, alpha, beta, num_steps):
    """x_btf: (B, T, F_in) f32; params = (w1 (F,H), b1 (1,H), w2 (H,O), b2 (1,O)).

    Returns (spk_rec, mem_rec), each (T, B, F_out), matching
    torch.stack(spk_rec/mem_rec, dim=0) in the PyTorch module.
    """
    w1, b1, w2, b2 = params
    B, T, F_in = x_btf.shape
    assert T == num_steps
    H = w1.shape[1]
    O = w2.shape[1]

    # Time-major rows for the hoisted Linear-1 matmul: (T*B, F_in).  ~1 KiB.
    x2d = jnp.transpose(x_btf, (1, 0, 2)).reshape(T * B, F_in)

    vmem = pltpu.MemorySpace.VMEM
    out = pl.pallas_call(
        make_fcnet_kernel(alpha, beta, num_steps=T),
        out_shape=jax.ShapeDtypeStruct((B, 2 * T * O), jnp.float32),  # (2, 256)
        in_specs=[pl.BlockSpec(memory_space=vmem)] * 5,   # whole-array VMEM blocks
        out_specs=pl.BlockSpec(memory_space=vmem),
        scratch_shapes=[pltpu.VMEM((T * B, H), jnp.float32)],  # spk1 slab
    )(x2d, w1, b1, w2, b2)

    spk_flat = out[:, :T * O]
    mem_flat = out[:, T * O:]
    spk_rec = jnp.transpose(spk_flat.reshape(B, T, O), (1, 0, 2))
    mem_rec = jnp.transpose(mem_flat.reshape(B, T, O), (1, 0, 2))
    return spk_rec, mem_rec


def simple_fcnet_reference(x_btf, params, *, alpha, beta, num_steps,
                           threshold=THRESHOLD):
    """Pure-JAX reference with identical semantics (lax.scan over time)."""
    w1, b1, w2, b2 = params
    a = float(np.clip(alpha, 0.0, 1.0))
    bb = float(np.clip(beta, 0.0, 1.0))
    tau = _alpha_tau(a, bb)
    B = x_btf.shape[0]
    H = w1.shape[1]
    O = w2.shape[1]

    def step(carry, x_t):
        se1, si1, m1, se2, si2 = carry
        cur1 = x_t @ w1 + b1[0]
        keep1 = jnp.where(m1 > threshold, 0.0, 1.0)
        nm1 = tau * (a * se1 + bb * si1) * keep1
        nse1 = (a * se1 + cur1) * keep1
        nsi1 = (bb * si1 - cur1) * keep1
        spk1 = jnp.where(nm1 > threshold, 1.0, 0.0)
        cur2 = spk1 @ w2 + b2[0]
        nm2 = tau * (a * se2 + bb * si2)
        nse2 = a * se2 + cur2
        nsi2 = bb * si2 - cur2
        spk2 = jnp.where(nm2 > threshold, 1.0, 0.0)
        return (nse1, nsi1, nm1, nse2, nsi2), (spk2, nm2)

    init = (jnp.zeros((B, H), jnp.float32), jnp.zeros((B, H), jnp.float32),
            jnp.zeros((B, H), jnp.float32), jnp.zeros((B, O), jnp.float32),
            jnp.zeros((B, O), jnp.float32))
    x_tbf = jnp.transpose(x_btf, (1, 0, 2))
    _, (spk, mem) = jax.lax.scan(step, init, x_tbf)
    return spk, mem


if __name__ == "__main__":
    # Small shapes consistent with the module: layer_config = [16, 32, 16]
    batch, num_steps, f_in, hidden, f_out = 2, 8, 16, 32, 16
    alpha, beta = 0.9, 0.8

    key = jax.random.PRNGKey(0)
    k_x, k_w1, k_b1, k_w2, k_b2 = jax.random.split(key, 5)

    # Deterministic param init (nn.Linear-style uniform(-1/sqrt(fan_in), ...)).
    s1 = 1.0 / np.sqrt(f_in)
    s2 = 1.0 / np.sqrt(hidden)
    w1 = jax.random.uniform(k_w1, (f_in, hidden), jnp.float32, -s1, s1)
    b1 = jax.random.uniform(k_b1, (1, hidden), jnp.float32, -s1, s1)
    w2 = jax.random.uniform(k_w2, (hidden, f_out), jnp.float32, -s2, s2)
    b2 = jax.random.uniform(k_b2, (1, f_out), jnp.float32, -s2, s2)
    params = (w1, b1, w2, b2)

    # Input: (B, num_steps, F_in), matching x[:, step] indexing in the module.
    x = 2.0 * jax.random.normal(k_x, (batch, num_steps, f_in), jnp.float32)

    # Keep the wrapper transposes/reshapes under the same jit as the kernel.
    fwd = jax.jit(functools.partial(simple_fcnet_pallas,
                                    alpha=alpha, beta=beta, num_steps=num_steps))
    spk_rec, mem_rec = fwd(x, params)
    jax.block_until_ready((spk_rec, mem_rec))

    spk_ref, mem_ref = simple_fcnet_reference(
        x, params, alpha=alpha, beta=beta, num_steps=num_steps)

    np.testing.assert_allclose(np.asarray(mem_rec), np.asarray(mem_ref),
                               atol=2e-3, rtol=1e-3)
    np.testing.assert_allclose(np.asarray(spk_rec), np.asarray(spk_ref),
                               atol=1e-6)
    assert spk_rec.shape == (num_steps, batch, f_out)
    assert mem_rec.shape == (num_steps, batch, f_out)

    print("KERNEL_OK")
</pallas_src>

<mosaic_0001>
module attributes {stable_mosaic.version = 11 : i64} {
  func.func @kernel(%arg0: memref<16x16xf32, #tpu.memory_space<vmem>>, %arg1: memref<16x32xf32, #tpu.memory_space<vmem>>, %arg2: memref<1x32xf32, #tpu.memory_space<vmem>>, %arg3: memref<32x16xf32, #tpu.memory_space<vmem>>, %arg4: memref<1x16xf32, #tpu.memory_space<vmem>>, %arg5: memref<2x256xf32, #tpu.memory_space<vmem>>, %arg6: memref<16x32xf32, #tpu.memory_space<vmem>>) attributes {dimension_semantics = [], scalar_prefetch = 0 : i64, scratch_operands = 1 : i64, tpu.core_type = #tpu.core_type<tc>} {
    %c0 = arith.constant 0 : index
    %c0_0 = arith.constant 0 : index
    %0 = vector.load %arg0[%c0, %c0_0] : memref<16x16xf32, #tpu.memory_space<vmem>>, vector<16x16xf32>
    %c0_1 = arith.constant 0 : index
    %c0_2 = arith.constant 0 : index
    %1 = vector.load %arg1[%c0_1, %c0_2] : memref<16x32xf32, #tpu.memory_space<vmem>>, vector<16x32xf32>
    %cst = arith.constant dense<0.000000e+00> : vector<16x32xf32>
    %2 = tpu.matmul %0, %1, %cst {dimension_numbers = #tpu.dot_dimension_numbers<[1], [0], [0], [1], [0, 0, 1, 1], [], []>} : vector<16x16xf32>, vector<16x32xf32>, vector<16x32xf32> -> vector<16x32xf32>
    %c0_3 = arith.constant 0 : index
    %c0_4 = arith.constant 0 : index
    %3 = vector.load %arg2[%c0_3, %c0_4] : memref<1x32xf32, #tpu.memory_space<vmem>>, vector<1x32xf32>
    %4 = vector.broadcast %3 : vector<1x32xf32> to vector<16x32xf32>
    %5 = arith.addf %2, %4 : vector<16x32xf32>
    %cst_5 = arith.constant 0.000000e+00 : f32
    %6 = vector.broadcast %cst_5 : f32 to vector<2x32xf32>
    %cst_6 = arith.constant 0.000000e+00 : f32
    %7 = vector.broadcast %cst_6 : f32 to vector<2x32xf32>
    %cst_7 = arith.constant 0.000000e+00 : f32
    %8 = vector.broadcast %cst_7 : f32 to vector<2x32xf32>
    %9 = vector.extract_strided_slice %5 {offsets = [0, 0], sizes = [2, 32], strides = [1, 1]} : vector<16x32xf32> to vector<2x32xf32>
    %cst_8 = arith.constant 1.000000e+00 : f32
    %10 = vector.broadcast %cst_8 : f32 to vector<2x32xf32>
    %11 = arith.cmpf ogt, %8, %10 : vector<2x32xf32>
    %cst_9 = arith.constant 0.000000e+00 : f32
    %cst_10 = arith.constant 1.000000e+00 : f32
    %12 = vector.broadcast %cst_9 : f32 to vector<2x32xf32>
    %13 = vector.broadcast %cst_10 : f32 to vector<2x32xf32>
    %14 = arith.select %11, %12, %13 : vector<2x32xi1>, vector<2x32xf32>
    %cst_11 = arith.constant 0.899999976 : f32
    %15 = vector.broadcast %cst_11 : f32 to vector<2x32xf32>
    %16 = arith.mulf %15, %6 : vector<2x32xf32>
    %cst_12 = arith.constant 8.000000e-01 : f32
    %17 = vector.broadcast %cst_12 : f32 to vector<2x32xf32>
    %18 = arith.mulf %17, %7 : vector<2x32xf32>
    %19 = arith.addf %16, %18 : vector<2x32xf32>
    %cst_13 = arith.constant 0.894530475 : f32
    %20 = vector.broadcast %cst_13 : f32 to vector<2x32xf32>
    %21 = arith.mulf %20, %19 : vector<2x32xf32>
    %22 = arith.mulf %21, %14 : vector<2x32xf32>
    %cst_14 = arith.constant 0.899999976 : f32
    %23 = vector.broadcast %cst_14 : f32 to vector<2x32xf32>
    %24 = arith.mulf %23, %6 : vector<2x32xf32>
    %25 = arith.addf %24, %9 : vector<2x32xf32>
    %26 = arith.mulf %25, %14 : vector<2x32xf32>
    %cst_15 = arith.constant 8.000000e-01 : f32
    %27 = vector.broadcast %cst_15 : f32 to vector<2x32xf32>
    %28 = arith.mulf %27, %7 : vector<2x32xf32>
    %29 = arith.subf %28, %9 : vector<2x32xf32>
    %30 = arith.mulf %29, %14 : vector<2x32xf32>
    %cst_16 = arith.constant 1.000000e+00 : f32
    %31 = vector.broadcast %cst_16 : f32 to vector<2x32xf32>
    %32 = arith.cmpf ogt, %22, %31 : vector<2x32xf32>
    %cst_17 = arith.constant 1.000000e+00 : f32
    %cst_18 = arith.constant 0.000000e+00 : f32
    %33 = vector.broadcast %cst_17 : f32 to vector<2x32xf32>
    %34 = vector.broadcast %cst_18 : f32 to vector<2x32xf32>
    %35 = arith.select %32, %33, %34 : vector<2x32xi1>, vector<2x32xf32>
    %c0_19 = arith.constant 0 : index
    %c0_20 = arith.constant 0 : index
    %36 = vector.load %arg6[%c0_19, %c0_20] : memref<16x32xf32, #tpu.memory_space<vmem>>, vector<2x32xf32>
    tpu.vector_store %arg6[%c0_19, %c0_20], %35 {strides = array<i32>} : memref<16x32xf32, #tpu.memory_space<vmem>>, vector<2x32xf32>,
    %37 = vector.extract_strided_slice %5 {offsets = [2, 0], sizes = [2, 32], strides = [1, 1]} : vector<16x32xf32> to vector<2x32xf32>
    %cst_21 = arith.constant 1.000000e+00 : f32
    %38 = vector.broadcast %cst_21 : f32 to vector<2x32xf32>
    %39 = arith.cmpf ogt, %22, %38 : vector<2x32xf32>
    %cst_22 = arith.constant 0.000000e+00 : f32
    %cst_23 = arith.constant 1.000000e+00 : f32
    %40 = vector.broadcast %cst_22 : f32 to vector<2x32xf32>
    %41 = vector.broadcast %cst_23 : f32 to vector<2x32xf32>
    %42 = arith.select %39, %40, %41 : vector<2x32xi1>, vector<2x32xf32>
    %cst_24 = arith.constant 0.899999976 : f32
    %43 = vector.broadcast %cst_24 : f32 to vector<2x32xf32>
    %44 = arith.mulf %43, %26 : vector<2x32xf32>
    %cst_25 = arith.constant 8.000000e-01 : f32
    %45 = vector.broadcast %cst_25 : f32 to vector<2x32xf32>
    %46 = arith.mulf %45, %30 : vector<2x32xf32>
    %47 = arith.addf %44, %46 : vector<2x32xf32>
    %cst_26 = arith.constant 0.894530475 : f32
    %48 = vector.broadcast %cst_26 : f32 to vector<2x32xf32>
    %49 = arith.mulf %48, %47 : vector<2x32xf32>
    %50 = arith.mulf %49, %42 : vector<2x32xf32>
    %cst_27 = arith.constant 0.899999976 : f32
    %51 = vector.broadcast %cst_27 : f32 to vector<2x32xf32>
    %52 = arith.mulf %51, %26 : vector<2x32xf32>
    %53 = arith.addf %52, %37 : vector<2x32xf32>
    %54 = arith.mulf %53, %42 : vector<2x32xf32>
    %cst_28 = arith.constant 8.000000e-01 : f32
    %55 = vector.broadcast %cst_28 : f32 to vector<2x32xf32>
    %56 = arith.mulf %55, %30 : vector<2x32xf32>
    %57 = arith.subf %56, %37 : vector<2x32xf32>
    %58 = arith.mulf %57, %42 : vector<2x32xf32>
    %cst_29 = arith.constant 1.000000e+00 : f32
    %59 = vector.broadcast %cst_29 : f32 to vector<2x32xf32>
    %60 = arith.cmpf ogt, %50, %59 : vector<2x32xf32>
    %cst_30 = arith.constant 1.000000e+00 : f32
    %cst_31 = arith.constant 0.000000e+00 : f32
    %61 = vector.broadcast %cst_30 : f32 to vector<2x32xf32>
    %62 = vector.broadcast %cst_31 : f32 to vector<2x32xf32>
    %63 = arith.select %60, %61, %62 : vector<2x32xi1>, vector<2x32xf32>
    %c2 = arith.constant 2 : index
    %c0_32 = arith.constant 0 : index
    %64 = vector.load %arg6[%c2, %c0_32] : memref<16x32xf32, #tpu.memory_space<vmem>>, vector<2x32xf32>
    tpu.vector_store %arg6[%c2, %c0_32], %63 {strides = array<i32>} : memref<16x32xf32, #tpu.memory_space<vmem>>, vector<2x32xf32>,
    %65 = vector.extract_strided_slice %5 {offsets = [4, 0], sizes = [2, 32], strides = [1, 1]} : vector<16x32xf32> to vector<2x32xf32>
    %cst_33 = arith.constant 1.000000e+00 : f32
    %66 = vector.broadcast %cst_33 : f32 to vector<2x32xf32>
    %67 = arith.cmpf ogt, %50, %66 : vector<2x32xf32>
    %cst_34 = arith.constant 0.000000e+00 : f32
    %cst_35 = arith.constant 1.000000e+00 : f32
    %68 = vector.broadcast %cst_34 : f32 to vector<2x32xf32>
    %69 = vector.broadcast %cst_35 : f32 to vector<2x32xf32>
    %70 = arith.select %67, %68, %69 : vector<2x32xi1>, vector<2x32xf32>
    %cst_36 = arith.constant 0.899999976 : f32
    %71 = vector.broadcast %cst_36 : f32 to vector<2x32xf32>
    %72 = arith.mulf %71, %54 : vector<2x32xf32>
    %cst_37 = arith.constant 8.000000e-01 : f32
    %73 = vector.broadcast %cst_37 : f32 to vector<2x32xf32>
    %74 = arith.mulf %73, %58 : vector<2x32xf32>
    %75 = arith.addf %72, %74 : vector<2x32xf32>
    %cst_38 = arith.constant 0.894530475 : f32
    %76 = vector.broadcast %cst_38 : f32 to vector<2x32xf32>
    %77 = arith.mulf %76, %75 : vector<2x32xf32>
    %78 = arith.mulf %77, %70 : vector<2x32xf32>
    %cst_39 = arith.constant 0.899999976 : f32
    %79 = vector.broadcast %cst_39 : f32 to vector<2x32xf32>
    %80 = arith.mulf %79, %54 : vector<2x32xf32>
    %81 = arith.addf %80, %65 : vector<2x32xf32>
    %82 = arith.mulf %81, %70 : vector<2x32xf32>
    %cst_40 = arith.constant 8.000000e-01 : f32
    %83 = vector.broadcast %cst_40 : f32 to vector<2x32xf32>
    %84 = arith.mulf %83, %58 : vector<2x32xf32>
    %85 = arith.subf %84, %65 : vector<2x32xf32>
    %86 = arith.mulf %85, %70 : vector<2x32xf32>
    %cst_41 = arith.constant 1.000000e+00 : f32
    %87 = vector.broadcast %cst_41 : f32 to vector<2x32xf32>
    %88 = arith.cmpf ogt, %78, %87 : vector<2x32xf32>
    %cst_42 = arith.constant 1.000000e+00 : f32
    %cst_43 = arith.constant 0.000000e+00 : f32
    %89 = vector.broadcast %cst_42 : f32 to vector<2x32xf32>
    %90 = vector.broadcast %cst_43 : f32 to vector<2x32xf32>
    %91 = arith.select %88, %89, %90 : vector<2x32xi1>, vector<2x32xf32>
    %c4 = arith.constant 4 : index
    %c0_44 = arith.constant 0 : index
    %92 = vector.load %arg6[%c4, %c0_44] : memref<16x32xf32, #tpu.memory_space<vmem>>, vector<2x32xf32>
    tpu.vector_store %arg6[%c4, %c0_44], %91 {strides = array<i32>} : memref<16x32xf32, #tpu.memory_space<vmem>>, vector<2x32xf32>,
    %93 = vector.extract_strided_slice %5 {offsets = [6, 0], sizes = [2, 32], strides = [1, 1]} : vector<16x32xf32> to vector<2x32xf32>
    %cst_45 = arith.constant 1.000000e+00 : f32
    %94 = vector.broadcast %cst_45 : f32 to vector<2x32xf32>
    %95 = arith.cmpf ogt, %78, %94 : vector<2x32xf32>
    %cst_46 = arith.constant 0.000000e+00 : f32
    %cst_47 = arith.constant 1.000000e+00 : f32
    %96 = vector.broadcast %cst_46 : f32 to vector<2x32xf32>
    %97 = vector.broadcast %cst_47 : f32 to vector<2x32xf32>
    %98 = arith.select %95, %96, %97 : vector<2x32xi1>, vector<2x32xf32>
    %cst_48 = arith.constant 0.899999976 : f32
    %99 = vector.broadcast %cst_48 : f32 to vector<2x32xf32>
    %100 = arith.mulf %99, %82 : vector<2x32xf32>
    %cst_49 = arith.constant 8.000000e-01 : f32
    %101 = vector.broadcast %cst_49 : f32 to vector<2x32xf32>
    %102 = arith.mulf %101, %86 : vector<2x32xf32>
    %103 = arith.addf %100, %102 : vector<2x32xf32>
    %cst_50 = arith.constant 0.894530475 : f32
    %104 = vector.broadcast %cst_50 : f32 to vector<2x32xf32>
    %105 = arith.mulf %104, %103 : vector<2x32xf32>
    %106 = arith.mulf %105, %98 : vector<2x32xf32>
    %cst_51 = arith.constant 0.899999976 : f32
    %107 = vector.broadcast %cst_51 : f32 to vector<2x32xf32>
    %108 = arith.mulf %107, %82 : vector<2x32xf32>
    %109 = arith.addf %108, %93 : vector<2x32xf32>
    %110 = arith.mulf %109, %98 : vector<2x32xf32>
    %cst_52 = arith.constant 8.000000e-01 : f32
    %111 = vector.broadcast %cst_52 : f32 to vector<2x32xf32>
    %112 = arith.mulf %111, %86 : vector<2x32xf32>
    %113 = arith.subf %112, %93 : vector<2x32xf32>
    %114 = arith.mulf %113, %98 : vector<2x32xf32>
    %cst_53 = arith.constant 1.000000e+00 : f32
    %115 = vector.broadcast %cst_53 : f32 to vector<2x32xf32>
    %116 = arith.cmpf ogt, %106, %115 : vector<2x32xf32>
    %cst_54 = arith.constant 1.000000e+00 : f32
    %cst_55 = arith.constant 0.000000e+00 : f32
    %117 = vector.broadcast %cst_54 : f32 to vector<2x32xf32>
    %118 = vector.broadcast %cst_55 : f32 to vector<2x32xf32>
    %119 = arith.select %116, %117, %118 : vector<2x32xi1>, vector<2x32xf32>
    %c6 = arith.constant 6 : index
    %c0_56 = arith.constant 0 : index
    %120 = vector.load %arg6[%c6, %c0_56] : memref<16x32xf32, #tpu.memory_space<vmem>>, vector<2x32xf32>
    tpu.vector_store %arg6[%c6, %c0_56], %119 {strides = array<i32>} : memref<16x32xf32, #tpu.memory_space<vmem>>, vector<2x32xf32>,
    %121 = vector.extract_strided_slice %5 {offsets = [8, 0], sizes = [2, 32], strides = [1, 1]} : vector<16x32xf32> to vector<2x32xf32>
    %cst_57 = arith.constant 1.000000e+00 : f32
    %122 = vector.broadcast %cst_57 : f32 to vector<2x32xf32>
    %123 = arith.cmpf ogt, %106, %122 : vector<2x32xf32>
    %cst_58 = arith.constant 0.000000e+00 : f32
    %cst_59 = arith.constant 1.000000e+00 : f32
    %124 = vector.broadcast %cst_58 : f32 to vector<2x32xf32>
    %125 = vector.broadcast %cst_59 : f32 to vector<2x32xf32>
    %126 = arith.select %123, %124, %125 : vector<2x32xi1>, vector<2x32xf32>
    %cst_60 = arith.constant 0.899999976 : f32
    %127 = vector.broadcast %cst_60 : f32 to vector<2x32xf32>
    %128 = arith.mulf %127, %110 : vector<2x32xf32>
    %cst_61 = arith.constant 8.000000e-01 : f32
    %129 = vector.broadcast %cst_61 : f32 to vector<2x32xf32>
    %130 = arith.mulf %129, %114 : vector<2x32xf32>
    %131 = arith.addf %128, %130 : vector<2x32xf32>
    %cst_62 = arith.constant 0.894530475 : f32
    %132 = vector.broadcast %cst_62 : f32 to vector<2x32xf32>
    %133 = arith.mulf %132, %131 : vector<2x32xf32>
    %134 = arith.mulf %133, %126 : vector<2x32xf32>
    %cst_63 = arith.constant 0.899999976 : f32
    %135 = vector.broadcast %cst_63 : f32 to vector<2x32xf32>
    %136 = arith.mulf %135, %110 : vector<2x32xf32>
    %137 = arith.addf %136, %121 : vector<2x32xf32>
    %138 = arith.mulf %137, %126 : vector<2x32xf32>
    %cst_64 = arith.constant 8.000000e-01 : f32
    %139 = vector.broadcast %cst_64 : f32 to vector<2x32xf32>
    %140 = arith.mulf %139, %114 : vector<2x32xf32>
    %141 = arith.subf %140, %121 : vector<2x32xf32>
    %142 = arith.mulf %141, %126 : vector<2x32xf32>
    %cst_65 = arith.constant 1.000000e+00 : f32
    %143 = vector.broadcast %cst_65 : f32 to vector<2x32xf32>
    %144 = arith.cmpf ogt, %134, %143 : vector<2x32xf32>
    %cst_66 = arith.constant 1.000000e+00 : f32
    %cst_67 = arith.constant 0.000000e+00 : f32
    %145 = vector.broadcast %cst_66 : f32 to vector<2x32xf32>
    %146 = vector.broadcast %cst_67 : f32 to vector<2x32xf32>
    %147 = arith.select %144, %145, %146 : vector<2x32xi1>, vector<2x32xf32>
    %c8 = arith.constant 8 : index
    %c0_68 = arith.constant 0 : index
    %148 = vector.load %arg6[%c8, %c0_68] : memref<16x32xf32, #tpu.memory_space<vmem>>, vector<2x32xf32>
    tpu.vector_store %arg6[%c8, %c0_68], %147 {strides = array<i32>} : memref<16x32xf32, #tpu.memory_space<vmem>>, vector<2x32xf32>,
    %149 = vector.extract_strided_slice %5 {offsets = [10, 0], sizes = [2, 32], strides = [1, 1]} : vector<16x32xf32> to vector<2x32xf32>
    %cst_69 = arith.constant 1.000000e+00 : f32
    %150 = vector.broadcast %cst_69 : f32 to vector<2x32xf32>
    %151 = arith.cmpf ogt, %134, %150 : vector<2x32xf32>
    %cst_70 = arith.constant 0.000000e+00 : f32
    %cst_71 = arith.constant 1.000000e+00 : f32
    %152 = vector.broadcast %cst_70 : f32 to vector<2x32xf32>
    %153 = vector.broadcast %cst_71 : f32 to vector<2x32xf32>
    %154 = arith.select %151, %152, %153 : vector<2x32xi1>, vector<2x32xf32>
    %cst_72 = arith.constant 0.899999976 : f32
    %155 = vector.broadcast %cst_72 : f32 to vector<2x32xf32>
    %156 = arith.mulf %155, %138 : vector<2x32xf32>
    %cst_73 = arith.constant 8.000000e-01 : f32
    %157 = vector.broadcast %cst_73 : f32 to vector<2x32xf32>
    %158 = arith.mulf %157, %142 : vector<2x32xf32>
    %159 = arith.addf %156, %158 : vector<2x32xf32>
    %cst_74 = arith.constant 0.894530475 : f32
    %160 = vector.broadcast %cst_74 : f32 to vector<2x32xf32>
    %161 = arith.mulf %160, %159 : vector<2x32xf32>
    %162 = arith.mulf %161, %154 : vector<2x32xf32>
    %cst_75 = arith.constant 0.899999976 : f32
    %163 = vector.broadcast %cst_75 : f32 to vector<2x32xf32>
    %164 = arith.mulf %163, %138 : vector<2x32xf32>
    %165 = arith.addf %164, %149 : vector<2x32xf32>
    %166 = arith.mulf %165, %154 : vector<2x32xf32>
    %cst_76 = arith.constant 8.000000e-01 : f32
    %167 = vector.broadcast %cst_76 : f32 to vector<2x32xf32>
    %168 = arith.mulf %167, %142 : vector<2x32xf32>
    %169 = arith.subf %168, %149 : vector<2x32xf32>
    %170 = arith.mulf %169, %154 : vector<2x32xf32>
    %cst_77 = arith.constant 1.000000e+00 : f32
    %171 = vector.broadcast %cst_77 : f32 to vector<2x32xf32>
    %172 = arith.cmpf ogt, %162, %171 : vector<2x32xf32>
    %cst_78 = arith.constant 1.000000e+00 : f32
    %cst_79 = arith.constant 0.000000e+00 : f32
    %173 = vector.broadcast %cst_78 : f32 to vector<2x32xf32>
    %174 = vector.broadcast %cst_79 : f32 to vector<2x32xf32>
    %175 = arith.select %172, %173, %174 : vector<2x32xi1>, vector<2x32xf32>
    %c10 = arith.constant 10 : index
    %c0_80 = arith.constant 0 : index
    %176 = vector.load %arg6[%c10, %c0_80] : memref<16x32xf32, #tpu.memory_space<vmem>>, vector<2x32xf32>
    tpu.vector_store %arg6[%c10, %c0_80], %175 {strides = array<i32>} : memref<16x32xf32, #tpu.memory_space<vmem>>, vector<2x32xf32>,
    %177 = vector.extract_strided_slice %5 {offsets = [12, 0], sizes = [2, 32], strides = [1, 1]} : vector<16x32xf32> to vector<2x32xf32>
    %cst_81 = arith.constant 1.000000e+00 : f32
    %178 = vector.broadcast %cst_81 : f32 to vector<2x32xf32>
    %179 = arith.cmpf ogt, %162, %178 : vector<2x32xf32>
    %cst_82 = arith.constant 0.000000e+00 : f32
    %cst_83 = arith.constant 1.000000e+00 : f32
    %180 = vector.broadcast %cst_82 : f32 to vector<2x32xf32>
    %181 = vector.broadcast %cst_83 : f32 to vector<2x32xf32>
    %182 = arith.select %179, %180, %181 : vector<2x32xi1>, vector<2x32xf32>
    %cst_84 = arith.constant 0.899999976 : f32
    %183 = vector.broadcast %cst_84 : f32 to vector<2x32xf32>
    %184 = arith.mulf %183, %166 : vector<2x32xf32>
    %cst_85 = arith.constant 8.000000e-01 : f32
    %185 = vector.broadcast %cst_85 : f32 to vector<2x32xf32>
    %186 = arith.mulf %185, %170 : vector<2x32xf32>
    %187 = arith.addf %184, %186 : vector<2x32xf32>
    %cst_86 = arith.constant 0.894530475 : f32
    %188 = vector.broadcast %cst_86 : f32 to vector<2x32xf32>
    %189 = arith.mulf %188, %187 : vector<2x32xf32>
    %190 = arith.mulf %189, %182 : vector<2x32xf32>
    %cst_87 = arith.constant 0.899999976 : f32
    %191 = vector.broadcast %cst_87 : f32 to vector<2x32xf32>
    %192 = arith.mulf %191, %166 : vector<2x32xf32>
    %193 = arith.addf %192, %177 : vector<2x32xf32>
    %194 = arith.mulf %193, %182 : vector<2x32xf32>
    %cst_88 = arith.constant 8.000000e-01 : f32
    %195 = vector.broadcast %cst_88 : f32 to vector<2x32xf32>
    %196 = arith.mulf %195, %170 : vector<2x32xf32>
    %197 = arith.subf %196, %177 : vector<2x32xf32>
    %198 = arith.mulf %197, %182 : vector<2x32xf32>
    %cst_89 = arith.constant 1.000000e+00 : f32
    %199 = vector.broadcast %cst_89 : f32 to vector<2x32xf32>
    %200 = arith.cmpf ogt, %190, %199 : vector<2x32xf32>
    %cst_90 = arith.constant 1.000000e+00 : f32
    %cst_91 = arith.constant 0.000000e+00 : f32
    %201 = vector.broadcast %cst_90 : f32 to vector<2x32xf32>
    %202 = vector.broadcast %cst_91 : f32 to vector<2x32xf32>
    %203 = arith.select %200, %201, %202 : vector<2x32xi1>, vector<2x32xf32>
    %c12 = arith.constant 12 : index
    %c0_92 = arith.constant 0 : index
    %204 = vector.load %arg6[%c12, %c0_92] : memref<16x32xf32, #tpu.memory_space<vmem>>, vector<2x32xf32>
    tpu.vector_store %arg6[%c12, %c0_92], %203 {strides = array<i32>} : memref<16x32xf32, #tpu.memory_space<vmem>>, vector<2x32xf32>,
    %cst_93 = arith.constant 1.000000e+00 : f32
    %205 = vector.broadcast %cst_93 : f32 to vector<2x32xf32>
    %206 = arith.cmpf ogt, %190, %205 : vector<2x32xf32>
    %cst_94 = arith.constant 0.000000e+00 : f32
    %cst_95 = arith.constant 1.000000e+00 : f32
    %207 = vector.broadcast %cst_94 : f32 to vector<2x32xf32>
    %208 = vector.broadcast %cst_95 : f32 to vector<2x32xf32>
    %209 = arith.select %206, %207, %208 : vector<2x32xi1>, vector<2x32xf32>
    %cst_96 = arith.constant 0.899999976 : f32
    %210 = vector.broadcast %cst_96 : f32 to vector<2x32xf32>
    %211 = arith.mulf %210, %194 : vector<2x32xf32>
    %cst_97 = arith.constant 8.000000e-01 : f32
    %212 = vector.broadcast %cst_97 : f32 to vector<2x32xf32>
    %213 = arith.mulf %212, %198 : vector<2x32xf32>
    %214 = arith.addf %211, %213 : vector<2x32xf32>
    %cst_98 = arith.constant 0.894530475 : f32
    %215 = vector.broadcast %cst_98 : f32 to vector<2x32xf32>
    %216 = arith.mulf %215, %214 : vector<2x32xf32>
    %217 = arith.mulf %216, %209 : vector<2x32xf32>
    %cst_99 = arith.constant 1.000000e+00 : f32
    %218 = vector.broadcast %cst_99 : f32 to vector<2x32xf32>
    %219 = arith.cmpf ogt, %217, %218 : vector<2x32xf32>
    %cst_100 = arith.constant 1.000000e+00 : f32
    %cst_101 = arith.constant 0.000000e+00 : f32
    %220 = vector.broadcast %cst_100 : f32 to vector<2x32xf32>
    %221 = vector.broadcast %cst_101 : f32 to vector<2x32xf32>
    %222 = arith.select %219, %220, %221 : vector<2x32xi1>, vector<2x32xf32>
    %c14 = arith.constant 14 : index
    %c0_102 = arith.constant 0 : index
    %223 = vector.load %arg6[%c14, %c0_102] : memref<16x32xf32, #tpu.memory_space<vmem>>, vector<2x32xf32>
    tpu.vector_store %arg6[%c14, %c0_102], %222 {strides = array<i32>} : memref<16x32xf32, #tpu.memory_space<vmem>>, vector<2x32xf32>,
    %c0_103 = arith.constant 0 : index
    %c0_104 = arith.constant 0 : index
    %224 = vector.load %arg6[%c0_103, %c0_104] : memref<16x32xf32, #tpu.memory_space<vmem>>, vector<16x32xf32>
    %c0_105 = arith.constant 0 : index
    %c0_106 = arith.constant 0 : index
    %225 = vector.load %arg3[%c0_105, %c0_106] : memref<32x16xf32, #tpu.memory_space<vmem>>, vector<32x16xf32>
    %cst_107 = arith.constant dense<0.000000e+00> : vector<16x16xf32>
    %226 = tpu.matmul %224, %225, %cst_107 {dimension_numbers = #tpu.dot_dimension_numbers<[1], [0], [0], [1], [0, 0, 1, 1], [], []>} : vector<16x32xf32>, vector<32x16xf32>, vector<16x16xf32> -> vector<16x16xf32>
    %c0_108 = arith.constant 0 : index
    %c0_109 = arith.constant 0 : index
    %227 = vector.load %arg4[%c0_108, %c0_109] : memref<1x16xf32, #tpu.memory_space<vmem>>, vector<1x16xf32>
    %228 = vector.broadcast %227 : vector<1x16xf32> to vector<16x16xf32>
    %229 = arith.addf %226, %228 : vector<16x16xf32>
    %cst_110 = arith.constant 0.000000e+00 : f32
    %230 = vector.broadcast %cst_110 : f32 to vector<2x16xf32>
    %cst_111 = arith.constant 0.000000e+00 : f32
    %231 = vector.broadcast %cst_111 : f32 to vector<2x16xf32>
    %232 = vector.extract_strided_slice %229 {offsets = [0, 0], sizes = [2, 16], strides = [1, 1]} : vector<16x16xf32> to vector<2x16xf32>
    %cst_112 = arith.constant 0.899999976 : f32
    %233 = vector.broadcast %cst_112 : f32 to vector<2x16xf32>
    %234 = arith.mulf %233, %230 : vector<2x16xf32>
    %cst_113 = arith.constant 8.000000e-01 : f32
    %235 = vector.broadcast %cst_113 : f32 to vector<2x16xf32>
    %236 = arith.mulf %235, %231 : vector<2x16xf32>
    %237 = arith.addf %234, %236 : vector<2x16xf32>
    %cst_114 = arith.constant 0.894530475 : f32
    %238 = vector.broadcast %cst_114 : f32 to vector<2x16xf32>
    %239 = arith.mulf %238, %237 : vector<2x16xf32>
    %cst_115 = arith.constant 0.899999976 : f32
    %240 = vector.broadcast %cst_115 : f32 to vector<2x16xf32>
    %241 = arith.mulf %240, %230 : vector<2x16xf32>
    %242 = arith.addf %241, %232 : vector<2x16xf32>
    %cst_116 = arith.constant 8.000000e-01 : f32
    %243 = vector.broadcast %cst_116 : f32 to vector<2x16xf32>
    %244 = arith.mulf %243, %231 : vector<2x16xf32>
    %245 = arith.subf %244, %232 : vector<2x16xf32>
    %cst_117 = arith.constant 1.000000e+00 : f32
    %246 = vector.broadcast %cst_117 : f32 to vector<2x16xf32>
    %247 = arith.cmpf ogt, %239, %246 : vector<2x16xf32>
    %cst_118 = arith.constant 1.000000e+00 : f32
    %cst_119 = arith.constant 0.000000e+00 : f32
    %248 = vector.broadcast %cst_118 : f32 to vector<2x16xf32>
    %249 = vector.broadcast %cst_119 : f32 to vector<2x16xf32>
    %250 = arith.select %247, %248, %249 : vector<2x16xi1>, vector<2x16xf32>
    %251 = vector.extract_strided_slice %229 {offsets = [2, 0], sizes = [2, 16], strides = [1, 1]} : vector<16x16xf32> to vector<2x16xf32>
    %cst_120 = arith.constant 0.899999976 : f32
    %252 = vector.broadcast %cst_120 : f32 to vector<2x16xf32>
    %253 = arith.mulf %252, %242 : vector<2x16xf32>
    %cst_121 = arith.constant 8.000000e-01 : f32
    %254 = vector.broadcast %cst_121 : f32 to vector<2x16xf32>
    %255 = arith.mulf %254, %245 : vector<2x16xf32>
    %256 = arith.addf %253, %255 : vector<2x16xf32>
    %cst_122 = arith.constant 0.894530475 : f32
    %257 = vector.broadcast %cst_122 : f32 to vector<2x16xf32>
    %258 = arith.mulf %257, %256 : vector<2x16xf32>
    %cst_123 = arith.constant 0.899999976 : f32
    %259 = vector.broadcast %cst_123 : f32 to vector<2x16xf32>
    %260 = arith.mulf %259, %242 : vector<2x16xf32>
    %261 = arith.addf %260, %251 : vector<2x16xf32>
    %cst_124 = arith.constant 8.000000e-01 : f32
    %262 = vector.broadcast %cst_124 : f32 to vector<2x16xf32>
    %263 = arith.mulf %262, %245 : vector<2x16xf32>
    %264 = arith.subf %263, %251 : vector<2x16xf32>
    %cst_125 = arith.constant 1.000000e+00 : f32
    %265 = vector.broadcast %cst_125 : f32 to vector<2x16xf32>
    %266 = arith.cmpf ogt, %258, %265 : vector<2x16xf32>
    %cst_126 = arith.constant 1.000000e+00 : f32
    %cst_127 = arith.constant 0.000000e+00 : f32
    %267 = vector.broadcast %cst_126 : f32 to vector<2x16xf32>
    %268 = vector.broadcast %cst_127 : f32 to vector<2x16xf32>
    %269 = arith.select %266, %267, %268 : vector<2x16xi1>, vector<2x16xf32>
    %270 = vector.extract_strided_slice %229 {offsets = [4, 0], sizes = [2, 16], strides = [1, 1]} : vector<16x16xf32> to vector<2x16xf32>
    %cst_128 = arith.constant 0.899999976 : f32
    %271 = vector.broadcast %cst_128 : f32 to vector<2x16xf32>
    %272 = arith.mulf %271, %261 : vector<2x16xf32>
    %cst_129 = arith.constant 8.000000e-01 : f32
    %273 = vector.broadcast %cst_129 : f32 to vector<2x16xf32>
    %274 = arith.mulf %273, %264 : vector<2x16xf32>
    %275 = arith.addf %272, %274 : vector<2x16xf32>
    %cst_130 = arith.constant 0.894530475 : f32
    %276 = vector.broadcast %cst_130 : f32 to vector<2x16xf32>
    %277 = arith.mulf %276, %275 : vector<2x16xf32>
    %cst_131 = arith.constant 0.899999976 : f32
    %278 = vector.broadcast %cst_131 : f32 to vector<2x16xf32>
    %279 = arith.mulf %278, %261 : vector<2x16xf32>
    %280 = arith.addf %279, %270 : vector<2x16xf32>
    %cst_132 = arith.constant 8.000000e-01 : f32
    %281 = vector.broadcast %cst_132 : f32 to vector<2x16xf32>
    %282 = arith.mulf %281, %264 : vector<2x16xf32>
    %283 = arith.subf %282, %270 : vector<2x16xf32>
    %cst_133 = arith.constant 1.000000e+00 : f32
    %284 = vector.broadcast %cst_133 : f32 to vector<2x16xf32>
    %285 = arith.cmpf ogt, %277, %284 : vector<2x16xf32>
    %cst_134 = arith.constant 1.000000e+00 : f32
    %cst_135 = arith.constant 0.000000e+00 : f32
    %286 = vector.broadcast %cst_134 : f32 to vector<2x16xf32>
    %287 = vector.broadcast %cst_135 : f32 to vector<2x16xf32>
    %288 = arith.select %285, %286, %287 : vector<2x16xi1>, vector<2x16xf32>
    %289 = vector.extract_strided_slice %229 {offsets = [6, 0], sizes = [2, 16], strides = [1, 1]} : vector<16x16xf32> to vector<2x16xf32>
    %cst_136 = arith.constant 0.899999976 : f32
    %290 = vector.broadcast %cst_136 : f32 to vector<2x16xf32>
    %291 = arith.mulf %290, %280 : vector<2x16xf32>
    %cst_137 = arith.constant 8.000000e-01 : f32
    %292 = vector.broadcast %cst_137 : f32 to vector<2x16xf32>
    %293 = arith.mulf %292, %283 : vector<2x16xf32>
    %294 = arith.addf %291, %293 : vector<2x16xf32>
    %cst_138 = arith.constant 0.894530475 : f32
    %295 = vector.broadcast %cst_138 : f32 to vector<2x16xf32>
    %296 = arith.mulf %295, %294 : vector<2x16xf32>
    %cst_139 = arith.constant 0.899999976 : f32
    %297 = vector.broadcast %cst_139 : f32 to vector<2x16xf32>
    %298 = arith.mulf %297, %280 : vector<2x16xf32>
    %299 = arith.addf %298, %289 : vector<2x16xf32>
    %cst_140 = arith.constant 8.000000e-01 : f32
    %300 = vector.broadcast %cst_140 : f32 to vector<2x16xf32>
    %301 = arith.mulf %300, %283 : vector<2x16xf32>
    %302 = arith.subf %301, %289 : vector<2x16xf32>
    %cst_141 = arith.constant 1.000000e+00 : f32
    %303 = vector.broadcast %cst_141 : f32 to vector<2x16xf32>
    %304 = arith.cmpf ogt, %296, %303 : vector<2x16xf32>
    %cst_142 = arith.constant 1.000000e+00 : f32
    %cst_143 = arith.constant 0.000000e+00 : f32
    %305 = vector.broadcast %cst_142 : f32 to vector<2x16xf32>
    %306 = vector.broadcast %cst_143 : f32 to vector<2x16xf32>
    %307 = arith.select %304, %305, %306 : vector<2x16xi1>, vector<2x16xf32>
    %308 = vector.extract_strided_slice %229 {offsets = [8, 0], sizes = [2, 16], strides = [1, 1]} : vector<16x16xf32> to vector<2x16xf32>
    %cst_144 = arith.constant 0.899999976 : f32
    %309 = vector.broadcast %cst_144 : f32 to vector<2x16xf32>
    %310 = arith.mulf %309, %299 : vector<2x16xf32>
    %cst_145 = arith.constant 8.000000e-01 : f32
    %311 = vector.broadcast %cst_145 : f32 to vector<2x16xf32>
    %312 = arith.mulf %311, %302 : vector<2x16xf32>
    %313 = arith.addf %310, %312 : vector<2x16xf32>
    %cst_146 = arith.constant 0.894530475 : f32
    %314 = vector.broadcast %cst_146 : f32 to vector<2x16xf32>
    %315 = arith.mulf %314, %313 : vector<2x16xf32>
    %cst_147 = arith.constant 0.899999976 : f32
    %316 = vector.broadcast %cst_147 : f32 to vector<2x16xf32>
    %317 = arith.mulf %316, %299 : vector<2x16xf32>
    %318 = arith.addf %317, %308 : vector<2x16xf32>
    %cst_148 = arith.constant 8.000000e-01 : f32
    %319 = vector.broadcast %cst_148 : f32 to vector<2x16xf32>
    %320 = arith.mulf %319, %302 : vector<2x16xf32>
    %321 = arith.subf %320, %308 : vector<2x16xf32>
    %cst_149 = arith.constant 1.000000e+00 : f32
    %322 = vector.broadcast %cst_149 : f32 to vector<2x16xf32>
    %323 = arith.cmpf ogt, %315, %322 : vector<2x16xf32>
    %cst_150 = arith.constant 1.000000e+00 : f32
    %cst_151 = arith.constant 0.000000e+00 : f32
    %324 = vector.broadcast %cst_150 : f32 to vector<2x16xf32>
    %325 = vector.broadcast %cst_151 : f32 to vector<2x16xf32>
    %326 = arith.select %323, %324, %325 : vector<2x16xi1>, vector<2x16xf32>
    %327 = vector.extract_strided_slice %229 {offsets = [10, 0], sizes = [2, 16], strides = [1, 1]} : vector<16x16xf32> to vector<2x16xf32>
    %cst_152 = arith.constant 0.899999976 : f32
    %328 = vector.broadcast %cst_152 : f32 to vector<2x16xf32>
    %329 = arith.mulf %328, %318 : vector<2x16xf32>
    %cst_153 = arith.constant 8.000000e-01 : f32
    %330 = vector.broadcast %cst_153 : f32 to vector<2x16xf32>
    %331 = arith.mulf %330, %321 : vector<2x16xf32>
    %332 = arith.addf %329, %331 : vector<2x16xf32>
    %cst_154 = arith.constant 0.894530475 : f32
    %333 = vector.broadcast %cst_154 : f32 to vector<2x16xf32>
    %334 = arith.mulf %333, %332 : vector<2x16xf32>
    %cst_155 = arith.constant 0.899999976 : f32
    %335 = vector.broadcast %cst_155 : f32 to vector<2x16xf32>
    %336 = arith.mulf %335, %318 : vector<2x16xf32>
    %337 = arith.addf %336, %327 : vector<2x16xf32>
    %cst_156 = arith.constant 8.000000e-01 : f32
    %338 = vector.broadcast %cst_156 : f32 to vector<2x16xf32>
    %339 = arith.mulf %338, %321 : vector<2x16xf32>
    %340 = arith.subf %339, %327 : vector<2x16xf32>
    %cst_157 = arith.constant 1.000000e+00 : f32
    %341 = vector.broadcast %cst_157 : f32 to vector<2x16xf32>
    %342 = arith.cmpf ogt, %334, %341 : vector<2x16xf32>
    %cst_158 = arith.constant 1.000000e+00 : f32
    %cst_159 = arith.constant 0.000000e+00 : f32
    %343 = vector.broadcast %cst_158 : f32 to vector<2x16xf32>
    %344 = vector.broadcast %cst_159 : f32 to vector<2x16xf32>
    %345 = arith.select %342, %343, %344 : vector<2x16xi1>, vector<2x16xf32>
    %346 = vector.extract_strided_slice %229 {offsets = [12, 0], sizes = [2, 16], strides = [1, 1]} : vector<16x16xf32> to vector<2x16xf32>
    %cst_160 = arith.constant 0.899999976 : f32
    %347 = vector.broadcast %cst_160 : f32 to vector<2x16xf32>
    %348 = arith.mulf %347, %337 : vector<2x16xf32>
    %cst_161 = arith.constant 8.000000e-01 : f32
    %349 = vector.broadcast %cst_161 : f32 to vector<2x16xf32>
    %350 = arith.mulf %349, %340 : vector<2x16xf32>
    %351 = arith.addf %348, %350 : vector<2x16xf32>
    %cst_162 = arith.constant 0.894530475 : f32
    %352 = vector.broadcast %cst_162 : f32 to vector<2x16xf32>
    %353 = arith.mulf %352, %351 : vector<2x16xf32>
    %cst_163 = arith.constant 0.899999976 : f32
    %354 = vector.broadcast %cst_163 : f32 to vector<2x16xf32>
    %355 = arith.mulf %354, %337 : vector<2x16xf32>
    %356 = arith.addf %355, %346 : vector<2x16xf32>
    %cst_164 = arith.constant 8.000000e-01 : f32
    %357 = vector.broadcast %cst_164 : f32 to vector<2x16xf32>
    %358 = arith.mulf %357, %340 : vector<2x16xf32>
    %359 = arith.subf %358, %346 : vector<2x16xf32>
    %cst_165 = arith.constant 1.000000e+00 : f32
    %360 = vector.broadcast %cst_165 : f32 to vector<2x16xf32>
    %361 = arith.cmpf ogt, %353, %360 : vector<2x16xf32>
    %cst_166 = arith.constant 1.000000e+00 : f32
    %cst_167 = arith.constant 0.000000e+00 : f32
    %362 = vector.broadcast %cst_166 : f32 to vector<2x16xf32>
    %363 = vector.broadcast %cst_167 : f32 to vector<2x16xf32>
    %364 = arith.select %361, %362, %363 : vector<2x16xi1>, vector<2x16xf32>
    %cst_168 = arith.constant 0.899999976 : f32
    %365 = vector.broadcast %cst_168 : f32 to vector<2x16xf32>
    %366 = arith.mulf %365, %356 : vector<2x16xf32>
    %cst_169 = arith.constant 8.000000e-01 : f32
    %367 = vector.broadcast %cst_169 : f32 to vector<2x16xf32>
    %368 = arith.mulf %367, %359 : vector<2x16xf32>
    %369 = arith.addf %366, %368 : vector<2x16xf32>
    %cst_170 = arith.constant 0.894530475 : f32
    %370 = vector.broadcast %cst_170 : f32 to vector<2x16xf32>
    %371 = arith.mulf %370, %369 : vector<2x16xf32>
    %cst_171 = arith.constant 1.000000e+00 : f32
    %372 = vector.broadcast %cst_171 : f32 to vector<2x16xf32>
    %373 = arith.cmpf ogt, %371, %372 : vector<2x16xf32>
    %cst_172 = arith.constant 1.000000e+00 : f32
    %cst_173 = arith.constant 0.000000e+00 : f32
    %374 = vector.broadcast %cst_172 : f32 to vector<2x16xf32>
    %375 = vector.broadcast %cst_173 : f32 to vector<2x16xf32>
    %376 = arith.select %373, %374, %375 : vector<2x16xi1>, vector<2x16xf32>
    %377 = tpu.concatenate %250, %269, %288, %307, %326, %345, %364, %376 in 1 : vector<2x16xf32>, vector<2x16xf32>, vector<2x16xf32>, vector<2x16xf32>, vector<2x16xf32>, vector<2x16xf32>, vector<2x16xf32>, vector<2x16xf32> -> vector<2x128xf32>
    %c0_174 = arith.constant 0 : index
    %c0_175 = arith.constant 0 : index
    %378 = vector.load %arg5[%c0_174, %c0_175] : memref<2x256xf32, #tpu.memory_space<vmem>>, vector<2x128xf32>
    tpu.vector_store %arg5[%c0_174, %c0_175], %377 {strides = array<i32>} : memref<2x256xf32, #tpu.memory_space<vmem>>, vector<2x128xf32>,
    %379 = tpu.concatenate %239, %258, %277, %296, %315, %334, %353, %371 in 1 : vector<2x16xf32>, vector<2x16xf32>, vector<2x16xf32>, vector<2x16xf32>, vector<2x16xf32>, vector<2x16xf32>, vector<2x16xf32>, vector<2x16xf32> -> vector<2x128xf32>
    %c0_176 = arith.constant 0 : index
    %c128 = arith.constant 128 : index
    %380 = vector.load %arg5[%c0_176, %c128] : memref<2x256xf32, #tpu.memory_space<vmem>>, vector<2x128xf32>
    tpu.vector_store %arg5[%c0_176, %c128], %379 {strides = array<i32>} : memref<2x256xf32, #tpu.memory_space<vmem>>, vector<2x128xf32>,
    return
  }
}

</mosaic_0001>

<llo_original>
// kernel: simple_fcnet_pallas.1
$region0: #{simple_fcnet_pallas.1}
  #allocation0 [shape = 'u32[]', space=smem, size = 0x4, offset = 0x4, fixed_abs, tag = 'smem constant byte address 0x4 - core index']
  #allocation1 [shape = 'u32[72,128]{1,0:T(1,128)}', space=vmem, size = 0x9000, scoped, tag = 'internal scratch']
  #allocation2 [shape = 'f32[16,32]{1,0:T(8,128)}', space=vmem, size = 0x2000, scoped, tag = 'scratch operand']
  %s0 = inlined_call_operand.vmem [shape: f32[16,16], index: 0, kind: input, shape index: {}]
  %s1 = inlined_call_operand.vmem [shape: f32[16,32], index: 1, kind: input, shape index: {}]
  %s2 = inlined_call_operand.vmem [shape: f32[1,32], index: 2, kind: input, shape index: {}]
  %s3 = inlined_call_operand.vmem [shape: f32[32,16], index: 3, kind: input, shape index: {}]
  %s4 = inlined_call_operand.vmem [shape: f32[1,16], index: 4, kind: input, shape index: {}]
  %s5 = inlined_call_operand.vmem [shape: f32[2,256], index: 5, kind: output, shape index: {}]
  %s6 = sld [smem:[#allocation0]]
  $region30: #{simple_fcnet_pallas.1} parent=0
    _
  %s8 = ssub.s32 1, %s6
  %s9 = scalar_select 0, %s8, %s6
  // Predicated region
  $region2: #{simple_fcnet_pallas.1} parent=0 // pred_check
    _
  $region3: #{simple_fcnet_pallas.1} parent=0 // pred_check_branch
    %11 = sbr.rel (0) target = $region5
  $region4: #{simple_fcnet_pallas.1} parent=0 // pred_region
    _
  $region5: #{simple_fcnet_pallas.1} parent=0 // pred_fallthru
    _
  // Predicated region
  $region6: #{simple_fcnet_pallas.1} parent=0 // pred_check
    _
  $region7: #{simple_fcnet_pallas.1} parent=0 // pred_check_branch
    %13 = sbr.rel (0) target = $region9
  $region8: #{simple_fcnet_pallas.1} parent=0 // pred_region
    _
  $region9: #{simple_fcnet_pallas.1} parent=0 // pred_fallthru
    _
  // Predicated region
  $region10: #{simple_fcnet_pallas.1} parent=0 // pred_check
    _
  $region11: #{simple_fcnet_pallas.1} parent=0 // pred_check_branch
    %15 = sbr.rel (0) target = $region13
  $region12: #{simple_fcnet_pallas.1} parent=0 // pred_region
    _
  $region13: #{simple_fcnet_pallas.1} parent=0 // pred_fallthru
    _
  // Predicated region
  $region14: #{simple_fcnet_pallas.1} parent=0 // pred_check
    _
  $region15: #{simple_fcnet_pallas.1} parent=0 // pred_check_branch
    %17 = sbr.rel (0) target = $region17
  $region16: #{simple_fcnet_pallas.1} parent=0 // pred_region
    _
  $region17: #{simple_fcnet_pallas.1} parent=0 // pred_fallthru
    _
  // Predicated region
  $region18: #{simple_fcnet_pallas.1} parent=0 // pred_check
    _
  $region19: #{simple_fcnet_pallas.1} parent=0 // pred_check_branch
    %19 = sbr.rel (0) target = $region21
  $region20: #{simple_fcnet_pallas.1} parent=0 // pred_region
    _
  $region21: #{simple_fcnet_pallas.1} parent=0 // pred_fallthru
    _
  %v20 = vld [vmem:[%s0] sm:$0xff]
  %v21 = vld [vmem:[%s0 + $0x8] sm:$0xff]
  %v22 = vld [vmem:[%s1] sm:$0xff]
  %v23 = vld [vmem:[%s1 + $0x8] sm:$0xff]
  %v24 = vld [vmem:[%s2] sm:$0x1]
  %v26 = vperm.slane %v24, 0
  %vm28 = vcmask 130048
  %v30 = vsel %vm28, %v20, 0
  %v33 = vsel %vm28, %v21, 0
  %35 = vmatpush.msra.mxu0 0.0
  %36 = vmatpush.msra.mxu0 0.0
  %37 = vmatpush.msra.mxu0 0.0
  %38 = vmatpush.msra.mxu0 0.0
  %39 = vmatpush.msra.mxu0 0.0
  %40 = vmatpush.msra.mxu0 0.0
  %41 = vmatpush.msra.mxu0 0.0
  %42 = vmatpush.msra.mxu0 0.0
  %43 = vmatpush.msra.mxu0 0.0
  %44 = vmatpush.msra.mxu0 0.0
  %45 = vmatpush.msra.mxu0 0.0
  %46 = vmatpush.msra.mxu0 0.0
  %47 = vmatpush.msra.mxu0 0.0
  %48 = vmatpush.msra.mxu0 0.0
  %49 = vmatpush.msra.mxu0 %v23
  %50 = vmatpush.msra.mxu0 %v22
  %51 = vmatmul.f32.gmra.mxu0 %v30
  %v52 = vpop.f32.mrf.mxu0
  %v53 = vadd.f32 %v26, %v52
  %54 = vmatmul.f32.gmra.mxu0 %v33
  %v55 = vpop.f32.mrf.mxu0
  %v56 = vadd.f32 %v26, %v55
  %57 = vdwg.mxu0
  %vm58 = vcmp.gt.f32.partialorder 0.0, 1.0
  %v59 = vsel %vm58, 0.0, 1.0
  %v60 = vmul.f32 %v59, 0.0
  %v61 = vadd.f32 %v53, 0.0
  %v62 = vmul.f32 %v61, %v59
  %v63 = vsub.f32 0.0, %v53
  %v64 = vmul.f32 %v63, %v59
  %vm65 = vcmp.gt.f32.partialorder %v60, 1.0
  %v66 = vsel %vm65, 1.0, 0.0
  %vm67 = vcmask 254976
  %68 = vst.msk [vmem:[#allocation2] sm:$0x3] %vm67, %v66
  %v69 = vsel %vm65, 0.0, 1.0
  %v70 = vmul.f32 %v62, 0.9
  %v71 = vmul.f32 %v64, 0.8
  %v72 = vadd.f32 %v70, %v71
  %v73 = vmul.f32 %v72, 0.8945305
  %v74 = vmul.f32 %v73, %v69
  %v76 = vrot.slane %v53, 2
  %v78 = vadd.f32 %v70, %v76
  %v79 = vmul.f32 %v78, %v69
  %v80 = vsub.f32 %v71, %v76
  %v81 = vmul.f32 %v80, %v69
  %vm82 = vcmp.gt.f32.partialorder %v74, 1.0
  %v83 = vsel %vm82, 1.0, 0.0
  %84 = vst.msk [vmem:[#allocation2 + $0x2] sm:$0x3] %vm67, %v83
  %v85 = vsel %vm82, 0.0, 1.0
  %v86 = vmul.f32 %v79, 0.9
  %v87 = vmul.f32 %v81, 0.8
  %v88 = vadd.f32 %v86, %v87
  %v89 = vmul.f32 %v88, 0.8945305
  %v90 = vmul.f32 %v89, %v85
  %v91 = vrot.slane %v53, 4
  %v93 = vadd.f32 %v86, %v91
  %v94 = vmul.f32 %v93, %v85
  %v95 = vsub.f32 %v87, %v91
  %v96 = vmul.f32 %v95, %v85
  %vm97 = vcmp.gt.f32.partialorder %v90, 1.0
  %v98 = vsel %vm97, 1.0, 0.0
  %99 = vst.msk [vmem:[#allocation2 + $0x4] sm:$0x3] %vm67, %v98
  %v100 = vsel %vm97, 0.0, 1.0
  %v101 = vmul.f32 %v94, 0.9
  %v102 = vmul.f32 %v96, 0.8
  %v103 = vadd.f32 %v101, %v102
  %v104 = vmul.f32 %v103, 0.8945305
  %v105 = vmul.f32 %v104, %v100
  %v106 = vrot.slane %v53, 6
  %v108 = vadd.f32 %v101, %v106
  %v109 = vmul.f32 %v108, %v100
  %v110 = vsub.f32 %v102, %v106
  %v111 = vmul.f32 %v110, %v100
  %vm112 = vcmp.gt.f32.partialorder %v105, 1.0
  %v113 = vsel %vm112, 1.0, 0.0
  %114 = vst.msk [vmem:[#allocation2 + $0x6] sm:$0x3] %vm67, %v113
  %v115 = vsel %vm112, 0.0, 1.0
  %v116 = vmul.f32 %v109, 0.9
  %v117 = vmul.f32 %v111, 0.8
  %v118 = vadd.f32 %v116, %v117
  %v119 = vmul.f32 %v118, 0.8945305
  %v120 = vmul.f32 %v119, %v115
  %v121 = vadd.f32 %v116, %v56
  %v122 = vmul.f32 %v121, %v115
  %v123 = vsub.f32 %v117, %v56
  %v124 = vmul.f32 %v123, %v115
  %vm125 = vcmp.gt.f32.partialorder %v120, 1.0
  %v126 = vsel %vm125, 1.0, 0.0
  %127 = vst.msk [vmem:[#allocation2 + $0x8] sm:$0x3] %vm67, %v126
  %v128 = vsel %vm125, 0.0, 1.0
  %v129 = vmul.f32 %v122, 0.9
  %v130 = vmul.f32 %v124, 0.8
  %v131 = vadd.f32 %v129, %v130
  %v132 = vmul.f32 %v131, 0.8945305
  %v133 = vmul.f32 %v132, %v128
  %v135 = vrot.slane %v56, 2
  %v137 = vadd.f32 %v129, %v135
  %v138 = vmul.f32 %v137, %v128
  %v139 = vsub.f32 %v130, %v135
  %v140 = vmul.f32 %v139, %v128
  %vm141 = vcmp.gt.f32.partialorder %v133, 1.0
  %v142 = vsel %vm141, 1.0, 0.0
  %143 = vst.msk [vmem:[#allocation2 + $0xa] sm:$0x3] %vm67, %v142
  %v144 = vsel %vm141, 0.0, 1.0
  %v145 = vmul.f32 %v138, 0.9
  %v146 = vmul.f32 %v140, 0.8
  %v147 = vadd.f32 %v145, %v146
  %v148 = vmul.f32 %v147, 0.8945305
  %v149 = vmul.f32 %v148, %v144
  %v150 = vrot.slane %v56, 4
  %v152 = vadd.f32 %v145, %v150
  %v153 = vmul.f32 %v152, %v144
  %v154 = vsub.f32 %v146, %v150
  %v155 = vmul.f32 %v154, %v144
  %vm156 = vcmp.gt.f32.partialorder %v149, 1.0
  %v157 = vsel %vm156, 1.0, 0.0
  %158 = vst.msk [vmem:[#allocation2 + $0xc] sm:$0x3] %vm67, %v157
  %v159 = vsel %vm156, 0.0, 1.0
  %v160 = vmul.f32 %v153, 0.9
  %v161 = vmul.f32 %v155, 0.8
  %v162 = vadd.f32 %v160, %v161
  %v163 = vmul.f32 %v162, 0.8945305
  %v164 = vmul.f32 %v163, %v159
  %vm165 = vcmp.gt.f32.partialorder %v164, 1.0
  %v166 = vsel %vm165, 1.0, 0.0
  %167 = vst.msk [vmem:[#allocation2 + $0xe] sm:$0x3] %vm67, %v166
  %v168 = vld [vmem:[#allocation2] sm:$0xff]
  %v169 = vld [vmem:[#allocation2 + $0x8] sm:$0xff]
  %v170 = vld [vmem:[%s3] sm:$0xff]
  %v171 = vld [vmem:[%s3 + $0x8] sm:$0xff]
  %v172 = vld [vmem:[%s3 + $0x10] sm:$0xff]
  %v173 = vld [vmem:[%s3 + $0x18] sm:$0xff]
  %v174 = vld [vmem:[%s4] sm:$0x1]
  %v176 = vperm.slane %v174, 0
  %vm178 = vcmask 261120
  %v180 = vsel %vm178, %v168, 0
  %v183 = vsel %vm178, %v169, 0
  %185 = vmatpush.msra.mxu0 0.0
  %186 = vmatpush.msra.mxu0 0.0
  %187 = vmatpush.msra.mxu0 0.0
  %188 = vmatpush.msra.mxu0 0.0
  %189 = vmatpush.msra.mxu0 0.0
  %190 = vmatpush.msra.mxu0 0.0
  %191 = vmatpush.msra.mxu0 0.0
  %192 = vmatpush.msra.mxu0 0.0
  %193 = vmatpush.msra.mxu0 0.0
  %194 = vmatpush.msra.mxu0 0.0
  %195 = vmatpush.msra.mxu0 0.0
  %196 = vmatpush.msra.mxu0 0.0
  %197 = vmatpush.msra.mxu0 %v173
  %198 = vmatpush.msra.mxu0 %v172
  %199 = vmatpush.msra.mxu0 %v171
  %200 = vmatpush.msra.mxu0 %v170
  %201 = vmatmul.f32.gmra.mxu0 %v180
  %v202 = vpop.f32.mrf.mxu0
  %v203 = vadd.f32 %v176, %v202
  %204 = vmatmul.f32.gmra.mxu0 %v183
  %v205 = vpop.f32.mrf.mxu0
  %v206 = vadd.f32 %v176, %v205
  %207 = vdwg.mxu0
  %v208 = vadd.f32 %v203, 0.0
  %v209 = vsub.f32 0.0, %v203
  %v210 = vsel %vm58, 1.0, 0.0
  %v211 = vmul.f32 %v208, 0.9
  %v212 = vmul.f32 %v209, 0.8
  %v213 = vadd.f32 %v211, %v212
  %v214 = vmul.f32 %v213, 0.8945305
  %v216 = vrot.slane %v203, 2
  %v218 = vadd.f32 %v211, %v216
  %v219 = vsub.f32 %v212, %v216
  %vm220 = vcmp.gt.f32.partialorder %v214, 1.0
  %v221 = vsel %vm220, 1.0, 0.0
  %v222 = vmul.f32 %v218, 0.9
  %v223 = vmul.f32 %v219, 0.8
  %v224 = vadd.f32 %v222, %v223
  %v225 = vmul.f32 %v224, 0.8945305
  %v226 = vrot.slane %v203, 4
  %v228 = vadd.f32 %v222, %v226
  %v229 = vsub.f32 %v223, %v226
  %vm230 = vcmp.gt.f32.partialorder %v225, 1.0
  %v231 = vsel %vm230, 1.0, 0.0
  %v232 = vmul.f32 %v228, 0.9
  %v233 = vmul.f32 %v229, 0.8
  %v234 = vadd.f32 %v232, %v233
  %v235 = vmul.f32 %v234, 0.8945305
  %v236 = vrot.slane %v203, 6
  %v238 = vadd.f32 %v232, %v236
  %v239 = vsub.f32 %v233, %v236
  %vm240 = vcmp.gt.f32.partialorder %v235, 1.0
  %v241 = vsel %vm240, 1.0, 0.0
  %v242 = vmul.f32 %v238, 0.9
  %v243 = vmul.f32 %v239, 0.8
  %v244 = vadd.f32 %v242, %v243
  %v245 = vmul.f32 %v244, 0.8945305
  %v246 = vadd.f32 %v242, %v206
  %v247 = vsub.f32 %v243, %v206
  %vm248 = vcmp.gt.f32.partialorder %v245, 1.0
  %v249 = vsel %vm248, 1.0, 0.0
  %v250 = vmul.f32 %v246, 0.9
  %v251 = vmul.f32 %v247, 0.8
  %v252 = vadd.f32 %v250, %v251
  %v253 = vmul.f32 %v252, 0.8945305
  %v255 = vrot.slane %v206, 2
  %v257 = vadd.f32 %v250, %v255
  %v258 = vsub.f32 %v251, %v255
  %vm259 = vcmp.gt.f32.partialorder %v253, 1.0
  %v260 = vsel %vm259, 1.0, 0.0
  %v261 = vmul.f32 %v257, 0.9
  %v262 = vmul.f32 %v258, 0.8
  %v263 = vadd.f32 %v261, %v262
  %v264 = vmul.f32 %v263, 0.8945305
  %v265 = vrot.slane %v206, 4
  %v267 = vadd.f32 %v261, %v265
  %v268 = vsub.f32 %v262, %v265
  %vm269 = vcmp.gt.f32.partialorder %v264, 1.0
  %v270 = vsel %vm269, 1.0, 0.0
  %v271 = vmul.f32 %v267, 0.9
  %v272 = vmul.f32 %v268, 0.8
  %v273 = vadd.f32 %v271, %v272
  %v274 = vmul.f32 %v273, 0.8945305
  %vm275 = vcmp.gt.f32.partialorder %v274, 1.0
  %v276 = vsel %vm275, 1.0, 0.0
  %278 = vrot.lane.b32.xlu0 %v221, 16
  %v279 = vpop.permute.xlu0 %278
  %282 = vrot.lane.b32.xlu0 %v231, 32
  %v283 = vpop.permute.xlu0 %282
  %286 = vrot.lane.b32.xlu0 %v241, 48
  %v287 = vpop.permute.xlu0 %286
  %290 = vrot.lane.b32.xlu0 %v249, 64
  %v291 = vpop.permute.xlu0 %290
  %294 = vrot.lane.b32.xlu0 %v260, 80
  %v295 = vpop.permute.xlu0 %294
  %298 = vrot.lane.b32.xlu0 %v270, 96
  %v299 = vpop.permute.xlu0 %298
  %302 = vrot.lane.b32.xlu0 %v276, 112
  %v303 = vpop.permute.xlu0 %302
  %v305 = vsel %vm28, %v210, %v279
  %v306 = vsel %vm178, %v305, %v283
  %vm307 = vcmask 392192
  %v308 = vsel %vm307, %v306, %v287
  %vm309 = vcmask 523264
  %v310 = vsel %vm309, %v308, %v291
  %vm311 = vcmask 654336
  %v312 = vsel %vm311, %v310, %v295
  %vm313 = vcmask 785408
  %v314 = vsel %vm313, %v312, %v299
  %vm315 = vcmask 916480
  %v316 = vsel %vm315, %v314, %v303
  %317 = vst [vmem:[%s5] sm:$0x3] %v316
  %319 = vrot.lane.b32.xlu0 %v214, 16
  %v320 = vpop.permute.xlu0 %319
  %323 = vrot.lane.b32.xlu0 %v225, 32
  %v324 = vpop.permute.xlu0 %323
  %327 = vrot.lane.b32.xlu0 %v235, 48
  %v328 = vpop.permute.xlu0 %327
  %331 = vrot.lane.b32.xlu0 %v245, 64
  %v332 = vpop.permute.xlu0 %331
  %335 = vrot.lane.b32.xlu0 %v253, 80
  %v336 = vpop.permute.xlu0 %335
  %339 = vrot.lane.b32.xlu0 %v264, 96
  %v340 = vpop.permute.xlu0 %339
  %343 = vrot.lane.b32.xlu0 %v274, 112
  %v344 = vpop.permute.xlu0 %343
  %v346 = vsel %vm28, 0.0, %v320
  %v347 = vsel %vm178, %v346, %v324
  %v348 = vsel %vm307, %v347, %v328
  %v349 = vsel %vm309, %v348, %v332
  %v350 = vsel %vm311, %v349, %v336
  %v351 = vsel %vm313, %v350, %v340
  %v352 = vsel %vm315, %v351, %v344
  %353 = vst [vmem:[%s5 + $0x2] sm:$0x3] %v352
  // Predicated region
  $region22: #{simple_fcnet_pallas.1} parent=0 // pred_check
    _
  $region23: #{simple_fcnet_pallas.1} parent=0 // pred_check_branch
    %355 = sbr.rel (0) target = $region25
  $region24: #{simple_fcnet_pallas.1} parent=0 // pred_region
    _
  $region25: #{simple_fcnet_pallas.1} parent=0 // pred_fallthru
    _
  // Predicated region
  $region26: #{simple_fcnet_pallas.1} parent=0 // pred_check
    _
  $region27: #{simple_fcnet_pallas.1} parent=0 // pred_check_branch
    %357 = sbr.rel (0) target = $region29
  $region28: #{simple_fcnet_pallas.1} parent=0 // pred_region
    _
  $region29: #{simple_fcnet_pallas.1} parent=0 // pred_fallthru
    _

</llo_original>
